<compile_context>
chip_gen: v6e
topology: v6e:2x2x1
jax: 0.10.0
libtpu: 0.0.40
codegen_flags: <defaults>
</compile_context>

<pallas_src>
import jax
import jax.numpy as jnp
from jax.experimental import pallas as pl
from jax.experimental.pallas import tpu as pltpu

_LANE = 128
_SUBLANE = 8


def _round_up(n: int, m: int) -> int:
    return ((n + m - 1) // m) * m


def _assist_kernel(x_ref, w_ref, b_ref, y_ref):
    # MXU: (TB, K) @ (K, N_pad), f32 accumulation. x is cast to the weight
    # (MXU) dtype in-register; it is NOT materialized in bf16 in HBM.
    x = x_ref[...].astype(w_ref.dtype)
    h = jnp.dot(x, w_ref[...], preferred_element_type=jnp.float32)
    h = h + b_ref[...]                                   # (1, N_pad) broadcast, VPU f32
    y_ref[...] = jax.nn.sigmoid(h).astype(y_ref.dtype)   # logistic -> EUP


def prepare_params(w, b, *, param_dtype=jnp.bfloat16):
    """One-time parameter prep (call once, reuse across forward calls).

    Casts the (in_dim, out_dim) weight to the MXU compute dtype and zero-pads
    out_dim up to a multiple of 128 so the kernel's output block is lane-dense.
    """
    K, N = w.shape
    N_pad = _round_up(N, _LANE)
    w_c = w.astype(param_dtype)
    b_c = b.astype(jnp.float32).reshape(1, N)
    if N_pad == N:
        return w_c, b_c
    w_p = jnp.zeros((K, N_pad), param_dtype).at[:, :N].set(w_c)
    b_p = jnp.zeros((1, N_pad), jnp.float32).at[:, :N].set(b_c)
    return w_p, b_p


def assist_forward(x, w_p, b_p, *, out_dim=None, out_dtype=jnp.float32, row_block=1024):
    """sigmoid(x @ w + b). `w_p`, `b_p` come from prepare_params (out_dim padded)."""
    B, K = x.shape
    Kw, N_pad = w_p.shape
    assert K == Kw, "weight in_dim mismatch"
    N = N_pad if out_dim is None else out_dim

    # Row tile: multiple of 8 sublanes, capped at row_block (clamped to >= 8).
    row_block = max(_SUBLANE, (row_block // _SUBLANE) * _SUBLANE)
    TB = min(_round_up(B, _SUBLANE), row_block)
    # Megacore (v7x has 2 TCs): make sure the "parallel" batch grid has >= 2
    # steps whenever the row tile is big enough to split.
    if _round_up(B, TB) // TB == 1 and TB >= 2 * _SUBLANE:
        TB = _round_up(TB // 2, _SUBLANE)
    B_pad = _round_up(B, TB)

    # Pad batch rows only in the ragged case (zero per-call cost when aligned).
    x_in = x if B_pad == B else jnp.zeros((B_pad, K), x.dtype).at[:B].set(x)

    grid = (B_pad // TB,)
    out_shape = jax.ShapeDtypeStruct((B_pad, N_pad), out_dtype)

    cost = pl.CostEstimate(
        flops=int(2 * B_pad * K * N_pad),
        transcendentals=int(B_pad * N_pad),
        bytes_accessed=int(
            x_in.size * x_in.dtype.itemsize
            + w_p.size * w_p.dtype.itemsize
            + b_p.size * b_p.dtype.itemsize
            + B_pad * N_pad * jnp.dtype(out_dtype).itemsize
        ),
    )

    # Rough VMEM footprint (worst case: everything double-buffered). Only raise
    # the scoped limit when the default would not fit; cap at v7x's 64 MiB.
    vmem_est = 2 * (
        TB * K * x_in.dtype.itemsize
        + K * N_pad * w_p.dtype.itemsize
        + N_pad * b_p.dtype.itemsize
        + TB * N_pad * jnp.dtype(out_dtype).itemsize
    )
    cp_kwargs = dict(dimension_semantics=("parallel",))
    if vmem_est > 32 * 1024 * 1024:
        cp_kwargs["vmem_limit_bytes"] = min(int(vmem_est * 5 // 4), 64 * 1024 * 1024)
    # TODO(synk): for very large in_dim*out_dim (weight block > VMEM) add N/K
    # grid axes with an f32 accumulator instead of a single resident block.

    def build(single_buffer_params: bool):
        resident_kwargs = (
            dict(pipeline_mode=pl.Buffered(buffer_count=1)) if single_buffer_params else {}
        )
        grid_spec = pltpu.PrefetchScalarGridSpec(
            num_scalar_prefetch=0,
            grid=grid,
            in_specs=[
                # Activations: tiled over the batch grid axis, full-K block.
                pl.BlockSpec((TB, K), lambda i: (i, 0)),
                # Weight / bias: same block every step -> resident in VMEM.
                pl.BlockSpec((K, N_pad), lambda i: (0, 0), **resident_kwargs),
                pl.BlockSpec((1, N_pad), lambda i: (0, 0), **resident_kwargs),
            ],
            out_specs=pl.BlockSpec((TB, N_pad), lambda i: (i, 0)),
        )
        return pl.pallas_call(
            _assist_kernel,
            out_shape=out_shape,
            grid_spec=grid_spec,
            compiler_params=pltpu.CompilerParams(**cp_kwargs),
            cost_estimate=cost,
        )

    try:
        # Constant-index weight/bias: single-buffer them (halves their resident
        # VMEM footprint; matters most on v7x's 64 MiB VMEM).
        y = build(True)(x_in, w_p, b_p)
    except Exception:
        # pipeline_mode=pl.Buffered(1) not supported here -> default buffering.
        y = build(False)(x_in, w_p, b_p)

    # Aligned fast path: nothing to slice off when B and out_dim divide the tiles.
    if B_pad != B or N_pad != N:
        y = y[:B, :N]
    return y


def _ref_forward(x, w, b):
    # Pure-JAX f32 reference mirroring the PyTorch module semantics.
    return jax.nn.sigmoid(x @ w + b)


if __name__ == "__main__":
    key = jax.random.PRNGKey(0)
    B, IN, OUT = 8, 32, 16   # small shapes consistent with AssistModel(in_dim, out_dim)

    kx, kw, kb = jax.random.split(key, 3)
    x = jax.random.normal(kx, (B, IN), jnp.float32)
    # Stored as (in_dim, out_dim) == W.T of PyTorch's nn.Linear weight; forward
    # semantics are identical.
    w = jax.random.normal(kw, (IN, OUT), jnp.float32) * 0.1
    b = jax.random.normal(kb, (OUT,), jnp.float32) * 0.1

    # One-time parameter prep (hoisted out of the per-call forward path).
    w_p, b_p = prepare_params(w, b)

    y = assist_forward(x, w_p, b_p, out_dim=OUT)
    jax.block_until_ready(y)

    y_ref = _ref_forward(x, w, b)
    assert y.shape == (B, OUT), y.shape
    # bf16 MXU operands with f32 accumulation -> small rounding vs f32 ref.
    assert jnp.allclose(y, y_ref, atol=1e-2, rtol=1e-2), (
        float(jnp.max(jnp.abs(y - y_ref))))

    print("KERNEL_OK")
</pallas_src>

<mosaic_0001>
module attributes {stable_mosaic.version = 11 : i64} {
  func.func @_assist_kernel(%arg0: i32, %arg1: memref<8x32xf32, #tpu.memory_space<vmem>>, %arg2: memref<32x128xbf16, #tpu.memory_space<vmem>>, %arg3: memref<1x128xf32, #tpu.memory_space<vmem>>, %arg4: memref<8x128xf32, #tpu.memory_space<vmem>>) attributes {dimension_semantics = [#tpu.dimension_semantics<parallel>], iteration_bounds = array<i64: 1>, scalar_prefetch = 0 : i64, scratch_operands = 0 : i64, tpu.core_type = #tpu.core_type<tc>, window_params = [{transform_indices = @transform_0, window_bounds = array<i64: 8, 32>}, {pipeline_mode = #tpu.pipeline_mode<synchronous>, transform_indices = @transform_1, window_bounds = array<i64: 32, 128>}, {pipeline_mode = #tpu.pipeline_mode<synchronous>, transform_indices = @transform_2, window_bounds = array<i64: 1, 128>}, {transform_indices = @transform_3, window_bounds = array<i64: 8, 128>}]} {
    %c0 = arith.constant 0 : index
    %c0_0 = arith.constant 0 : index
    %0 = vector.load %arg1[%c0, %c0_0] : memref<8x32xf32, #tpu.memory_space<vmem>>, vector<8x32xf32>
    %1 = arith.truncf %0 : vector<8x32xf32> to vector<8x32xbf16>
    %c0_1 = arith.constant 0 : index
    %c0_2 = arith.constant 0 : index
    %2 = vector.load %arg2[%c0_1, %c0_2] : memref<32x128xbf16, #tpu.memory_space<vmem>>, vector<32x128xbf16>
    %cst = arith.constant dense<0.000000e+00> : vector<8x128xf32>
    %3 = tpu.matmul %1, %2, %cst {dimension_numbers = #tpu.dot_dimension_numbers<[1], [0], [0], [1], [0, 0, 1, 1], [], []>} : vector<8x32xbf16>, vector<32x128xbf16>, vector<8x128xf32> -> vector<8x128xf32>
    %c0_3 = arith.constant 0 : index
    %c0_4 = arith.constant 0 : index
    %4 = vector.load %arg3[%c0_3, %c0_4] : memref<1x128xf32, #tpu.memory_space<vmem>>, vector<1x128xf32>
    %5 = vector.broadcast %4 : vector<1x128xf32> to vector<8x128xf32>
    %6 = arith.addf %3, %5 : vector<8x128xf32>
    %7 = arith.negf %6 : vector<8x128xf32>
    %8 = math.exp %7 : vector<8x128xf32>
    %cst_5 = arith.constant 1.000000e+00 : f32
    %9 = vector.broadcast %cst_5 : f32 to vector<8x128xf32>
    %10 = arith.addf %9, %8 : vector<8x128xf32>
    %11 = arith.divf %9, %10 : vector<8x128xf32>
    %c0_6 = arith.constant 0 : index
    %c0_7 = arith.constant 0 : index
    %12 = vector.load %arg4[%c0_6, %c0_7] : memref<8x128xf32, #tpu.memory_space<vmem>>, vector<8x128xf32>
    tpu.vector_store %arg4[%c0_6, %c0_7], %11 {strides = array<i32>} : memref<8x128xf32, #tpu.memory_space<vmem>>, vector<8x128xf32>,
    return
  }
  func.func @transform_0(%arg0: i32) -> (i32, i32) {
    %c0_i32 = arith.constant 0 : i32
    %c0_i32_0 = arith.constant 0 : i32
    return %arg0, %c0_i32 : i32, i32
  }
  func.func @transform_1(%arg0: i32) -> (i32, i32) {
    %c0_i32 = arith.constant 0 : i32
    %c0_i32_0 = arith.constant 0 : i32
    %c0_i32_1 = arith.constant 0 : i32
    return %c0_i32, %c0_i32_0 : i32, i32
  }
  func.func @transform_2(%arg0: i32) -> (i32, i32) {
    %c0_i32 = arith.constant 0 : i32
    %c0_i32_0 = arith.constant 0 : i32
    %c0_i32_1 = arith.constant 0 : i32
    return %c0_i32, %c0_i32_0 : i32, i32
  }
  func.func @transform_3(%arg0: i32) -> (i32, i32) {
    %c0_i32 = arith.constant 0 : i32
    %c0_i32_0 = arith.constant 0 : i32
    return %arg0, %c0_i32 : i32, i32
  }
}

module attributes {stable_mosaic.version = 11 : i64} {
  func.func @_assist_kernel(%arg0: i32, %arg1: memref<8x32xf32, #tpu.memory_space<vmem>>, %arg2: memref<32x128xbf16, #tpu.memory_space<vmem>>, %arg3: memref<1x128xf32, #tpu.memory_space<vmem>>, %arg4: memref<8x128xf32, #tpu.memory_space<vmem>>) attributes {dimension_semantics = [#tpu.dimension_semantics<parallel>], iteration_bounds = array<i64: 1>, scalar_prefetch = 0 : i64, scratch_operands = 0 : i64, tpu.core_type = #tpu.core_type<tc>, window_params = [{transform_indices = @transform_0, window_bounds = array<i64: 8, 32>}, {pipeline_mode = #tpu.pipeline_mode<synchronous>, transform_indices = @transform_1, window_bounds = array<i64: 32, 128>}, {pipeline_mode = #tpu.pipeline_mode<synchronous>, transform_indices = @transform_2, window_bounds = array<i64: 1, 128>}, {transform_indices = @transform_3, window_bounds = array<i64: 8, 128>}]} {
    %c0 = arith.constant 0 : index
    %c0_0 = arith.constant 0 : index
    %0 = vector.load %arg1[%c0, %c0_0] : memref<8x32xf32, #tpu.memory_space<vmem>>, vector<8x32xf32>
    %1 = arith.truncf %0 : vector<8x32xf32> to vector<8x32xbf16>
    %c0_1 = arith.constant 0 : index
    %c0_2 = arith.constant 0 : index
    %2 = vector.load %arg2[%c0_1, %c0_2] : memref<32x128xbf16, #tpu.memory_space<vmem>>, vector<32x128xbf16>
    %cst = arith.constant dense<0.000000e+00> : vector<8x128xf32>
    %3 = tpu.matmul %1, %2, %cst {dimension_numbers = #tpu.dot_dimension_numbers<[1], [0], [0], [1], [0, 0, 1, 1], [], []>} : vector<8x32xbf16>, vector<32x128xbf16>, vector<8x128xf32> -> vector<8x128xf32>
    %c0_3 = arith.constant 0 : index
    %c0_4 = arith.constant 0 : index
    %4 = vector.load %arg3[%c0_3, %c0_4] : memref<1x128xf32, #tpu.memory_space<vmem>>, vector<1x128xf32>
    %5 = vector.broadcast %4 : vector<1x128xf32> to vector<8x128xf32>
    %6 = arith.addf %3, %5 : vector<8x128xf32>
    %7 = arith.negf %6 : vector<8x128xf32>
    %8 = math.exp %7 : vector<8x128xf32>
    %cst_5 = arith.constant 1.000000e+00 : f32
    %9 = vector.broadcast %cst_5 : f32 to vector<8x128xf32>
    %10 = arith.addf %9, %8 : vector<8x128xf32>
    %11 = arith.divf %9, %10 : vector<8x128xf32>
    %c0_6 = arith.constant 0 : index
    %c0_7 = arith.constant 0 : index
    %12 = vector.load %arg4[%c0_6, %c0_7] : memref<8x128xf32, #tpu.memory_space<vmem>>, vector<8x128xf32>
    tpu.vector_store %arg4[%c0_6, %c0_7], %11 {strides = array<i32>} : memref<8x128xf32, #tpu.memory_space<vmem>>, vector<8x128xf32>,
    return
  }
  func.func @transform_0(%arg0: i32) -> (i32, i32) {
    %c0_i32 = arith.constant 0 : i32
    %c0_i32_0 = arith.constant 0 : i32
    return %arg0, %c0_i32 : i32, i32
  }
  func.func @transform_1(%arg0: i32) -> (i32, i32) {
    %c0_i32 = arith.constant 0 : i32
    %c0_i32_0 = arith.constant 0 : i32
    %c0_i32_1 = arith.constant 0 : i32
    return %c0_i32, %c0_i32_0 : i32, i32
  }
  func.func @transform_2(%arg0: i32) -> (i32, i32) {
    %c0_i32 = arith.constant 0 : i32
    %c0_i32_0 = arith.constant 0 : i32
    %c0_i32_1 = arith.constant 0 : i32
    return %c0_i32, %c0_i32_0 : i32, i32
  }
  func.func @transform_3(%arg0: i32) -> (i32, i32) {
    %c0_i32 = arith.constant 0 : i32
    %c0_i32_0 = arith.constant 0 : i32
    return %arg0, %c0_i32 : i32, i32
  }
}

</mosaic_0001>

<llo_original>
// kernel: tpu_custom_call.1
$region0: #{tpu_custom_call.1}
  #allocation0 [shape = 'u32[]', space=smem, size = 0x4, offset = 0x4, fixed_abs, tag = 'smem constant byte address 0x4 - core index']
  #allocation1 [shape = 'u32[144,128]{1,0:T(1,128)}', space=vmem, size = 0x12000, scoped, tag = 'internal scratch']
  %s0 = inlined_call_operand.hbm [shape: f32[8,32], index: 0, kind: input, shape index: {}]
  %s1 = inlined_call_operand.hbm [shape: bf16[32,128], index: 1, kind: input, shape index: {}]
  %s2 = inlined_call_operand.vmem [shape: f32[1,128], index: 2, kind: input, shape index: {}]
  %s3 = inlined_call_operand.hbm [shape: f32[8,128], index: 3, kind: output, shape index: {}]
  %s4 = sld [smem:[#allocation0]]
  $region30: #{tpu_custom_call.1} parent=0
    _
  %s6 = ssub.s32 1, %s4
  %s7 = scalar_select 0, %s6, %s4
  $region1: #{tpu_custom_call.1} parent=0
    #allocation2 [shape = 'u8[4096]{0}', space=vmem, size = 0x1000, scoped, tag = 'input window, operand 0, single buffered']
    #allocation3 [shape = 's32[1]{0}', space=sflag, size = 0x4, scoped, tag = 'scoped memory for tpu_custom_call.1']
    #allocation4 [shape = 's32[1]{0}', space=sflag, size = 0x4, scoped, tag = 'scoped memory for tpu_custom_call.1']
    #allocation5 [shape = 'u8[8192]{0}', space=vmem, size = 0x2000, scoped, tag = 'input window, operand 1, single buffered']
    #allocation6 [shape = 's32[1]{0}', space=sflag, size = 0x4, scoped, tag = 'scoped memory for tpu_custom_call.1']
    #allocation7 [shape = 'u8[4096]{0}', space=vmem, size = 0x1000, scoped, tag = 'output window, operand 0, single buffered']
    %8 = vsyncpa [#allocation3], 0
    %9 = vsyncpa [#allocation6], 0
    %10 = vsyncpa [#allocation4], 0
    // Predicated region
    $region2: #{tpu_custom_call.1} parent=1 // pred_check
      _
    $region3: #{tpu_custom_call.1} parent=1 // pred_check_branch
      %12 = sbr.rel (0) target = $region5
    $region4: #{tpu_custom_call.1} parent=1 // pred_region
      %s14 = ssub.s32 128, 128
      %15 = vsyncadd [#allocation3], %s14
      %s17 = sshll.u32 [#allocation2], 4
      %s18 = int_to_ptr.vmem [resolvable:$true] %s17
      %20 = dma.hbm_to_vmem [thread:$0]  %s0, 128, %s18, [#allocation3]
    $region5: #{tpu_custom_call.1} parent=1 // pred_fallthru
      _
    // Predicated region
    $region6: #{tpu_custom_call.1} parent=1 // pred_check
      _
    $region7: #{tpu_custom_call.1} parent=1 // pred_check_branch
      %22 = sbr.rel (0) target = $region9
    $region8: #{tpu_custom_call.1} parent=1 // pred_region
      %s24 = ssub.s32 256, 256
      %25 = vsyncadd [#allocation6], %s24
      %s26 = sshll.u32 [#allocation5], 4
      %s27 = int_to_ptr.vmem [resolvable:$true] %s26
      %32 = dma.hbm_to_vmem [thread:$0]  %s1, 256, %s27, [#allocation6], 64, 64, 4
    $region9: #{tpu_custom_call.1} parent=1 // pred_fallthru
      _
    // Predicated region
    $region10: #{tpu_custom_call.1} parent=1 // pred_check
      _
    $region11: #{tpu_custom_call.1} parent=1 // pred_check_branch
      %34 = sbr.rel (0) target = $region13
    $region12: #{tpu_custom_call.1} parent=1 // pred_region
      _
    $region13: #{tpu_custom_call.1} parent=1 // pred_fallthru
      _
    // Predicated region
    $region14: #{tpu_custom_call.1} parent=1 // pred_check
      _
    $region15: #{tpu_custom_call.1} parent=1 // pred_check_branch
      %36 = sbr.rel (0) target = $region17
    $region16: #{tpu_custom_call.1} parent=1 // pred_region
      %37 = dma.done [#allocation3], 128
    $region17: #{tpu_custom_call.1} parent=1 // pred_fallthru
      _
    // Predicated region
    $region18: #{tpu_custom_call.1} parent=1 // pred_check
      _
    $region19: #{tpu_custom_call.1} parent=1 // pred_check_branch
      %39 = sbr.rel (0) target = $region21
    $region20: #{tpu_custom_call.1} parent=1 // pred_region
      %40 = dma.done [#allocation6], 256
    $region21: #{tpu_custom_call.1} parent=1 // pred_fallthru
      _
    %v42 = vld [vmem:[#allocation2] sm:$0xff]
    %v43 = vpack.c.bf16 %v42, %v42
    %v44 = vld [vmem:[#allocation5] sm:$0xf]
    %v45 = vld [vmem:[#allocation5 + $0x4] sm:$0xf]
    %v46 = vld [vmem:[#allocation5 + $0x8] sm:$0xf]
    %v47 = vld [vmem:[#allocation5 + $0xc] sm:$0xf]
    %v48 = vld [vmem:[%s2] sm:$0x1]
    %v50 = vlaneseq
    %v51 = vshrl.u32 %v50, 7
    %v52 = vsub.s32 0, %v51
    %v53 = vrot.slane %v48, %v52
    %v59 = vunpack.c.l.b16 %v44
    %v60 = vunpack.c.l.b16 %v45
    %v61 = vunpack.c.l.b16 %v46
    %v62 = vunpack.c.l.b16 %v47
    %v63 = vpack.c.b16 %v60, %v59
    %v64 = vpack.c.b16 %v62, %v61
    %vm67 = vcmask 261120
    %v69 = vsel %vm67, %v43, 0
    %71 = vmatprep.subr.bf16.mxu0 0
    %72 = vmatpush1.bf16.msra.mxu0 0
    %73 = vmatprep.subr.bf16.mxu0 0
    %74 = vmatpush1.bf16.msra.mxu0 0
    %75 = vmatprep.subr.bf16.mxu0 0
    %76 = vmatpush1.bf16.msra.mxu0 0
    %77 = vmatprep.subr.bf16.mxu0 0
    %78 = vmatpush1.bf16.msra.mxu0 0
    %79 = vmatprep.subr.bf16.mxu0 0
    %80 = vmatpush1.bf16.msra.mxu0 0
    %81 = vmatprep.subr.bf16.mxu0 0
    %82 = vmatpush1.bf16.msra.mxu0 0
    %83 = vmatprep.subr.bf16.mxu0 0
    %84 = vmatpush1.bf16.msra.mxu0 %v64
    %85 = vmatprep.subr.bf16.mxu0 0
    %86 = vmatpush1.bf16.msra.mxu0 %v63
    %87 = vmatprep.subr.bf16.mxu0 0
    %88 = vmatpush2.bf16.msra.mxu0 0
    %89 = vmatprep.subr.bf16.mxu0 0
    %90 = vmatpush2.bf16.msra.mxu0 0
    %91 = vmatprep.subr.bf16.mxu0 0
    %92 = vmatpush2.bf16.msra.mxu0 0
    %93 = vmatprep.subr.bf16.mxu0 0
    %94 = vmatpush2.bf16.msra.mxu0 0
    %95 = vmatprep.subr.bf16.mxu0 0
    %96 = vmatpush2.bf16.msra.mxu0 0
    %97 = vmatprep.subr.bf16.mxu0 0
    %98 = vmatpush2.bf16.msra.mxu0 0
    %99 = vmatprep.subr.bf16.mxu0 0
    %100 = vmatpush2.bf16.msra.mxu0 0
    %101 = vmatprep.subr.bf16.mxu0 0
    %102 = vmatpush2.bf16.msra.mxu0 0
    %103 = vmatprep.mubr.bf16.mxu0 0
    %104 = vmatmul.mubr.bf16.gmra.mxu0 %v69
    %v105 = vpop.f32.mrf.mxu0
    %v106 = vadd.f32 %v53, %v105
    %v107 = vpop.f32.mrf.mxu0
    %v108 = vpop.f32.mrf.mxu0
    %v109 = vpop.f32.mrf.mxu0
    %110 = vdwg.mxu0
    %v111 = vxor.u32 %v106, 2147483648
    %v112 = vmul.f32 %v111, 1.442695
    %v113 = vpow.pop %v112
    %v114 = vadd.f32 %v113, 1.0
    %v115 = vrcp.pop %v114
    %v116 = vmul.f32 1.0, %v115
    %117 = vst [vmem:[#allocation7] sm:$0xff] %v116
    // Predicated region
    $region22: #{tpu_custom_call.1} parent=1 // pred_check
      _
    $region23: #{tpu_custom_call.1} parent=1 // pred_check_branch
      %119 = sbr.rel (0) target = $region25
    $region24: #{tpu_custom_call.1} parent=1 // pred_region
      %s121 = ssub.s32 128, 128
      %122 = vsyncadd [#allocation4], %s121
      %s124 = sshll.u32 [#allocation7], 4
      %s125 = int_to_ptr.vmem [resolvable:$true] %s124
      %127 = dma.vmem_to_hbm [thread:$0]  %s125, 128, %s3, [#allocation4]
    $region25: #{tpu_custom_call.1} parent=1 // pred_fallthru
      _
    // Predicated region
    $region26: #{tpu_custom_call.1} parent=1 // pred_check
      _
    $region27: #{tpu_custom_call.1} parent=1 // pred_check_branch
      %129 = sbr.rel (0) target = $region29
    $region28: #{tpu_custom_call.1} parent=1 // pred_region
      %130 = dma.done [#allocation4], 128
    $region29: #{tpu_custom_call.1} parent=1 // pred_fallthru
      _
    %131 = vsyncpa [#allocation3], 1
    %132 = vsyncpa [#allocation6], 1
    %133 = vsyncpa [#allocation4], 1

// kernel: tpu_custom_call.1
$region0: #{tpu_custom_call.1}
  #allocation0 [shape = 'u32[]', space=smem, size = 0x4, offset = 0x4, fixed_abs, tag = 'smem constant byte address 0x4 - core index']
  #allocation1 [shape = 'u32[144,128]{1,0:T(1,128)}', space=vmem, size = 0x12000, scoped, tag = 'internal scratch']
  %s0 = inlined_call_operand.hbm [shape: f32[8,32], index: 0, kind: input, shape index: {}]
  %s1 = inlined_call_operand.hbm [shape: bf16[32,128], index: 1, kind: input, shape index: {}]
  %s2 = inlined_call_operand.vmem [shape: f32[1,128], index: 2, kind: input, shape index: {}]
  %s3 = inlined_call_operand.hbm [shape: f32[8,128], index: 3, kind: output, shape index: {}]
  %s4 = sld [smem:[#allocation0]]
  $region30: #{tpu_custom_call.1} parent=0
    _
  %s6 = ssub.s32 1, %s4
  %s7 = scalar_select 0, %s6, %s4
  $region1: #{tpu_custom_call.1} parent=0
    #allocation2 [shape = 'u8[4096]{0}', space=vmem, size = 0x1000, scoped, tag = 'input window, operand 0, single buffered']
    #allocation3 [shape = 's32[1]{0}', space=sflag, size = 0x4, scoped, tag = 'scoped memory for tpu_custom_call.1']
    #allocation4 [shape = 's32[1]{0}', space=sflag, size = 0x4, scoped, tag = 'scoped memory for tpu_custom_call.1']
    #allocation5 [shape = 'u8[8192]{0}', space=vmem, size = 0x2000, scoped, tag = 'input window, operand 1, single buffered']
    #allocation6 [shape = 's32[1]{0}', space=sflag, size = 0x4, scoped, tag = 'scoped memory for tpu_custom_call.1']
    #allocation7 [shape = 'u8[4096]{0}', space=vmem, size = 0x1000, scoped, tag = 'output window, operand 0, single buffered']
    %8 = vsyncpa [#allocation3], 0
    %9 = vsyncpa [#allocation6], 0
    %10 = vsyncpa [#allocation4], 0
    // Predicated region
    $region2: #{tpu_custom_call.1} parent=1 // pred_check
      _
    $region3: #{tpu_custom_call.1} parent=1 // pred_check_branch
      %12 = sbr.rel (0) target = $region5
    $region4: #{tpu_custom_call.1} parent=1 // pred_region
      %s14 = ssub.s32 128, 128
      %15 = vsyncadd [#allocation3], %s14
      %s17 = sshll.u32 [#allocation2], 4
      %s18 = int_to_ptr.vmem [resolvable:$true] %s17
      %20 = dma.hbm_to_vmem [thread:$0]  %s0, 128, %s18, [#allocation3]
    $region5: #{tpu_custom_call.1} parent=1 // pred_fallthru
      _
    // Predicated region
    $region6: #{tpu_custom_call.1} parent=1 // pred_check
      _
    $region7: #{tpu_custom_call.1} parent=1 // pred_check_branch
      %22 = sbr.rel (0) target = $region9
    $region8: #{tpu_custom_call.1} parent=1 // pred_region
      %s24 = ssub.s32 256, 256
      %25 = vsyncadd [#allocation6], %s24
      %s26 = sshll.u32 [#allocation5], 4
      %s27 = int_to_ptr.vmem [resolvable:$true] %s26
      %32 = dma.hbm_to_vmem [thread:$0]  %s1, 256, %s27, [#allocation6], 64, 64, 4
    $region9: #{tpu_custom_call.1} parent=1 // pred_fallthru
      _
    // Predicated region
    $region10: #{tpu_custom_call.1} parent=1 // pred_check
      _
    $region11: #{tpu_custom_call.1} parent=1 // pred_check_branch
      %34 = sbr.rel (0) target = $region13
    $region12: #{tpu_custom_call.1} parent=1 // pred_region
      _
    $region13: #{tpu_custom_call.1} parent=1 // pred_fallthru
      _
    // Predicated region
    $region14: #{tpu_custom_call.1} parent=1 // pred_check
      _
    $region15: #{tpu_custom_call.1} parent=1 // pred_check_branch
      %36 = sbr.rel (0) target = $region17
    $region16: #{tpu_custom_call.1} parent=1 // pred_region
      %37 = dma.done [#allocation3], 128
    $region17: #{tpu_custom_call.1} parent=1 // pred_fallthru
      _
    // Predicated region
    $region18: #{tpu_custom_call.1} parent=1 // pred_check
      _
    $region19: #{tpu_custom_call.1} parent=1 // pred_check_branch
      %39 = sbr.rel (0) target = $region21
    $region20: #{tpu_custom_call.1} parent=1 // pred_region
      %40 = dma.done [#allocation6], 256
    $region21: #{tpu_custom_call.1} parent=1 // pred_fallthru
      _
    %v42 = vld [vmem:[#allocation2] sm:$0xff]
    %v43 = vpack.c.bf16 %v42, %v42
    %v44 = vld [vmem:[#allocation5] sm:$0xf]
    %v45 = vld [vmem:[#allocation5 + $0x4] sm:$0xf]
    %v46 = vld [vmem:[#allocation5 + $0x8] sm:$0xf]
    %v47 = vld [vmem:[#allocation5 + $0xc] sm:$0xf]
    %v48 = vld [vmem:[%s2] sm:$0x1]
    %v50 = vlaneseq
    %v51 = vshrl.u32 %v50, 7
    %v52 = vsub.s32 0, %v51
    %v53 = vrot.slane %v48, %v52
    %v59 = vunpack.c.l.b16 %v44
    %v60 = vunpack.c.l.b16 %v45
    %v61 = vunpack.c.l.b16 %v46
    %v62 = vunpack.c.l.b16 %v47
    %v63 = vpack.c.b16 %v60, %v59
    %v64 = vpack.c.b16 %v62, %v61
    %vm67 = vcmask 261120
    %v69 = vsel %vm67, %v43, 0
    %71 = vmatprep.subr.bf16.mxu0 0
    %72 = vmatpush1.bf16.msra.mxu0 0
    %73 = vmatprep.subr.bf16.mxu0 0
    %74 = vmatpush1.bf16.msra.mxu0 0
    %75 = vmatprep.subr.bf16.mxu0 0
    %76 = vmatpush1.bf16.msra.mxu0 0
    %77 = vmatprep.subr.bf16.mxu0 0
    %78 = vmatpush1.bf16.msra.mxu0 0
    %79 = vmatprep.subr.bf16.mxu0 0
    %80 = vmatpush1.bf16.msra.mxu0 0
    %81 = vmatprep.subr.bf16.mxu0 0
    %82 = vmatpush1.bf16.msra.mxu0 0
    %83 = vmatprep.subr.bf16.mxu0 0
    %84 = vmatpush1.bf16.msra.mxu0 %v64
    %85 = vmatprep.subr.bf16.mxu0 0
    %86 = vmatpush1.bf16.msra.mxu0 %v63
    %87 = vmatprep.subr.bf16.mxu0 0
    %88 = vmatpush2.bf16.msra.mxu0 0
    %89 = vmatprep.subr.bf16.mxu0 0
    %90 = vmatpush2.bf16.msra.mxu0 0
    %91 = vmatprep.subr.bf16.mxu0 0
    %92 = vmatpush2.bf16.msra.mxu0 0
    %93 = vmatprep.subr.bf16.mxu0 0
    %94 = vmatpush2.bf16.msra.mxu0 0
    %95 = vmatprep.subr.bf16.mxu0 0
    %96 = vmatpush2.bf16.msra.mxu0 0
    %97 = vmatprep.subr.bf16.mxu0 0
    %98 = vmatpush2.bf16.msra.mxu0 0
    %99 = vmatprep.subr.bf16.mxu0 0
    %100 = vmatpush2.bf16.msra.mxu0 0
    %101 = vmatprep.subr.bf16.mxu0 0
    %102 = vmatpush2.bf16.msra.mxu0 0
    %103 = vmatprep.mubr.bf16.mxu0 0
    %104 = vmatmul.mubr.bf16.gmra.mxu0 %v69
    %v105 = vpop.f32.mrf.mxu0
    %v106 = vadd.f32 %v53, %v105
    %v107 = vpop.f32.mrf.mxu0
    %v108 = vpop.f32.mrf.mxu0
    %v109 = vpop.f32.mrf.mxu0
    %110 = vdwg.mxu0
    %v111 = vxor.u32 %v106, 2147483648
    %v112 = vmul.f32 %v111, 1.442695
    %v113 = vpow.pop %v112
    %v114 = vadd.f32 %v113, 1.0
    %v115 = vrcp.pop %v114
    %v116 = vmul.f32 1.0, %v115
    %117 = vst [vmem:[#allocation7] sm:$0xff] %v116
    // Predicated region
    $region22: #{tpu_custom_call.1} parent=1 // pred_check
      _
    $region23: #{tpu_custom_call.1} parent=1 // pred_check_branch
      %119 = sbr.rel (0) target = $region25
    $region24: #{tpu_custom_call.1} parent=1 // pred_region
      %s121 = ssub.s32 128, 128
      %122 = vsyncadd [#allocation4], %s121
      %s124 = sshll.u32 [#allocation7], 4
      %s125 = int_to_ptr.vmem [resolvable:$true] %s124
      %127 = dma.vmem_to_hbm [thread:$0]  %s125, 128, %s3, [#allocation4]
    $region25: #{tpu_custom_call.1} parent=1 // pred_fallthru
      _
    // Predicated region
    $region26: #{tpu_custom_call.1} parent=1 // pred_check
      _
    $region27: #{tpu_custom_call.1} parent=1 // pred_check_branch
      %129 = sbr.rel (0) target = $region29
    $region28: #{tpu_custom_call.1} parent=1 // pred_region
      %130 = dma.done [#allocation4], 128
    $region29: #{tpu_custom_call.1} parent=1 // pred_fallthru
      _
    %131 = vsyncpa [#allocation3], 1
    %132 = vsyncpa [#allocation6], 1
    %133 = vsyncpa [#allocation4], 1

</llo_original>
